<compile_context>
chip_gen: v7x
topology: tpu7x:2x2x1
jax: 0.10.0
libtpu: 0.0.40
codegen_flags: <defaults>
</compile_context>

<pallas_src>
import functools

import jax
import jax.numpy as jnp
from jax.experimental import pallas as pl
from jax.experimental.pallas import tpu as pltpu

HIDDEN_DIM = 20      # config['u_hidden_dim']
NUM_LAYERS = 7       # config['u_layers'] (number of shared [ReLU, hidden] repeats)
IN_DIM = 3           # dim + 1  (x, y, t)
OUT_DIM = 1


def _round_up(x, m):
    return ((x + m - 1) // m) * m


def _generator_kernel(x_ref, y_ref, t_ref,
                      w_in_ref, b_in_ref, w_h_ref, b_h_ref,
                      w_out_ref, b_out_ref, o_ref, *, num_layers):
    # Row coordinates for this tile, lane-dense: shape (1, T)
    x = x_ref[0]
    y = y_ref[0]
    tt = t_ref[0]

    # Hoist all weight/bias loads (shared hidden layer is reused num_layers times).
    w_in = w_in_ref[...]        # (H, 3)   torch (out, in) layout
    b_in = b_in_ref[...]        # (H, 1)
    w_h = w_h_ref[...]          # (H, H)
    b_h = b_h_ref[...]          # (H, 1)
    w_out = w_out_ref[...]      # (1, H)
    b_out = b_out_ref[...]      # (1, 1)

    # Input Linear as 3 rank-1 broadcast FMAs on the VPU (K=3 would waste the MXU):
    #   h[i, r] = W_in[i,0]*x[r] + W_in[i,1]*y[r] + W_in[i,2]*t[r] + b_in[i]
    h = (w_in[:, 0:1] * x
         + w_in[:, 1:2] * y
         + w_in[:, 2:3] * tt
         + b_in)                                            # (H, T)

    # num_layers x [ReLU -> shared hidden Linear] on the MXU, rows on the lane axis.
    for _ in range(num_layers):
        h = jnp.dot(w_h, jnp.maximum(h, 0.0),
                    preferred_element_type=jnp.float32) + b_h   # (H, T)

    # Tanh (EUP) then output Linear: (1,H) @ (H,T) -> lane-dense (1, T) result.
    h = jnp.tanh(h)
    out = jnp.dot(w_out, h, preferred_element_type=jnp.float32) + b_out  # (1, T)
    o_ref[0] = out.astype(o_ref.dtype)


def _choose_tile(rows, max_tile_rows):
    """Lane-dense row tile (multiple of 128); keep >=2 grid steps when possible (v7x)."""
    r128 = _round_up(rows, 128)
    tile = min(max_tile_rows, r128)
    if r128 > 128 and r128 // tile < 2:
        tile = _round_up(r128 // 2, 128)
    return tile


def generator_forward(x0, y0, t, params, *, max_tile_rows=2048):
    """x0, y0, t: (N, M) float32 arrays. Returns (N, M, 1) like the torch module."""
    N, M = x0.shape
    rows = N * M

    tile = _choose_tile(rows, max_tile_rows)
    padded = _round_up(rows, tile)
    num_tiles = padded // tile

    def prep(a):
        a = a.reshape(-1).astype(jnp.float32)
        if padded != rows:
            a = jnp.pad(a, (0, padded - rows))
        return a.reshape(num_tiles, 1, tile)

    xr, yr, tr = prep(x0), prep(y0), prep(t)
    w_in, b_in, w_h, b_h, w_out, b_out = params

    kernel = functools.partial(_generator_kernel, num_layers=NUM_LAYERS)

    row_spec = pl.BlockSpec((1, 1, tile), lambda i: (i, 0, 0))
    full = lambda shape: pl.BlockSpec(shape, lambda i, _s=len(shape): (0,) * _s)

    out = pl.pallas_call(
        kernel,
        out_shape=jax.ShapeDtypeStruct((num_tiles, 1, tile), jnp.float32),
        grid_spec=pltpu.PrefetchScalarGridSpec(
            num_scalar_prefetch=0,
            grid=(num_tiles,),
            in_specs=[
                row_spec,                              # x rows (lane-dense)
                row_spec,                              # y rows
                row_spec,                              # t rows
                full((HIDDEN_DIM, IN_DIM)),            # W_in  (out, in)
                full((HIDDEN_DIM, 1)),                 # b_in
                full((HIDDEN_DIM, HIDDEN_DIM)),        # W_h   (shared)
                full((HIDDEN_DIM, 1)),                 # b_h
                full((OUT_DIM, HIDDEN_DIM)),           # W_out
                full((OUT_DIM, 1)),                    # b_out
            ],
            out_specs=row_spec,                        # lane-dense output
        ),
        compiler_params=pltpu.CompilerParams(
            dimension_semantics=("parallel",)),
    )(xr, yr, tr, w_in, b_in, w_h, b_h, w_out, b_out)

    return out.reshape(padded)[:rows].reshape(N, M, OUT_DIM)


def init_params(key):
    """Deterministic parameter init; shapes/layout match the torch Linears (out, in)."""
    ks = jax.random.split(key, 6)

    def uniform_pm(k, shape, fan_in):
        bound = 1.0 / jnp.sqrt(fan_in)
        return jax.random.uniform(k, shape, jnp.float32, -bound, bound)

    w_in = uniform_pm(ks[0], (HIDDEN_DIM, IN_DIM), IN_DIM)
    b_in = uniform_pm(ks[1], (HIDDEN_DIM, 1), IN_DIM)
    w_h = uniform_pm(ks[2], (HIDDEN_DIM, HIDDEN_DIM), HIDDEN_DIM)
    b_h = uniform_pm(ks[3], (HIDDEN_DIM, 1), HIDDEN_DIM)
    w_out = uniform_pm(ks[4], (OUT_DIM, HIDDEN_DIM), HIDDEN_DIM)
    b_out = uniform_pm(ks[5], (OUT_DIM, 1), HIDDEN_DIM)
    return (w_in, b_in, w_h, b_h, w_out, b_out)


def reference_forward(x0, y0, t, params):
    """Pure-JAX reference mirroring the torch forward exactly."""
    w_in, b_in, w_h, b_h, w_out, b_out = params
    inp = jnp.stack([x0, y0, t], axis=2)            # (N, M, 3)
    h = inp @ w_in.T + b_in[:, 0]
    for _ in range(NUM_LAYERS):
        h = jnp.maximum(h, 0.0) @ w_h.T + b_h[:, 0]
    h = jnp.tanh(h)
    return h @ w_out.T + b_out[:, 0]                # (N, M, 1)


if __name__ == "__main__":
    key = jax.random.PRNGKey(0)
    kp, kx, ky = jax.random.split(key, 3)

    params = init_params(kp)

    # Small shapes consistent with the module (torch uses (2500, 1); use (256, 1) here).
    N, M = 256, 1
    x0 = jax.random.normal(kx, (N, M), jnp.float32)
    y0 = jax.random.normal(ky, (N, M), jnp.float32)
    t = jnp.ones((N, M), jnp.float32)

    out = generator_forward(x0, y0, t, params)
    out = jax.block_until_ready(out)

    ref = reference_forward(x0, y0, t, params)
    assert out.shape == (N, M, 1), out.shape
    assert jnp.allclose(out, ref, atol=2e-5, rtol=1e-4), \
        float(jnp.max(jnp.abs(out - ref)))

    print("KERNEL_OK")
</pallas_src>

<mosaic_0001>
module attributes {stable_mosaic.version = 11 : i64} {
  func.func @_generator_kernel(%arg0: i32, %arg1: memref<1x1x128xf32, #tpu.memory_space<vmem>>, %arg2: memref<1x1x128xf32, #tpu.memory_space<vmem>>, %arg3: memref<1x1x128xf32, #tpu.memory_space<vmem>>, %arg4: memref<20x3xf32, #tpu.memory_space<vmem>>, %arg5: memref<20x1xf32, #tpu.memory_space<vmem>>, %arg6: memref<20x20xf32, #tpu.memory_space<vmem>>, %arg7: memref<20x1xf32, #tpu.memory_space<vmem>>, %arg8: memref<1x20xf32, #tpu.memory_space<vmem>>, %arg9: memref<1x1xf32, #tpu.memory_space<vmem>>, %arg10: memref<1x1x128xf32, #tpu.memory_space<vmem>>) attributes {dimension_semantics = [#tpu.dimension_semantics<parallel>], iteration_bounds = array<i64: 2>, scalar_prefetch = 0 : i64, scratch_operands = 0 : i64, tpu.core_type = #tpu.core_type<tc>, window_params = [{transform_indices = @transform_0, window_bounds = array<i64: 1, 1, 128>}, {transform_indices = @transform_1, window_bounds = array<i64: 1, 1, 128>}, {transform_indices = @transform_2, window_bounds = array<i64: 1, 1, 128>}, {pipeline_mode = #tpu.pipeline_mode<synchronous>, transform_indices = @transform_3, window_bounds = array<i64: 20, 3>}, {pipeline_mode = #tpu.pipeline_mode<synchronous>, transform_indices = @transform_4, window_bounds = array<i64: 20, 1>}, {pipeline_mode = #tpu.pipeline_mode<synchronous>, transform_indices = @transform_5, window_bounds = array<i64: 20, 20>}, {pipeline_mode = #tpu.pipeline_mode<synchronous>, transform_indices = @transform_6, window_bounds = array<i64: 20, 1>}, {pipeline_mode = #tpu.pipeline_mode<synchronous>, transform_indices = @transform_7, window_bounds = array<i64: 1, 20>}, {pipeline_mode = #tpu.pipeline_mode<synchronous>, transform_indices = @transform_8, window_bounds = array<i64: 1, 1>}, {transform_indices = @transform_9, window_bounds = array<i64: 1, 1, 128>}]} {
    %c0 = arith.constant 0 : index
    %c0_0 = arith.constant 0 : index
    %c0_1 = arith.constant 0 : index
    %0 = vector.load %arg1[%c0, %c0_0, %c0_1] : memref<1x1x128xf32, #tpu.memory_space<vmem>>, vector<1x1x128xf32>
    %1 = vector.shape_cast %0 : vector<1x1x128xf32> to vector<1x128xf32>
    %c0_2 = arith.constant 0 : index
    %c0_3 = arith.constant 0 : index
    %c0_4 = arith.constant 0 : index
    %2 = vector.load %arg2[%c0_2, %c0_3, %c0_4] : memref<1x1x128xf32, #tpu.memory_space<vmem>>, vector<1x1x128xf32>
    %3 = vector.shape_cast %2 : vector<1x1x128xf32> to vector<1x128xf32>
    %c0_5 = arith.constant 0 : index
    %c0_6 = arith.constant 0 : index
    %c0_7 = arith.constant 0 : index
    %4 = vector.load %arg3[%c0_5, %c0_6, %c0_7] : memref<1x1x128xf32, #tpu.memory_space<vmem>>, vector<1x1x128xf32>
    %5 = vector.shape_cast %4 : vector<1x1x128xf32> to vector<1x128xf32>
    %c0_8 = arith.constant 0 : index
    %c0_9 = arith.constant 0 : index
    %6 = vector.load %arg4[%c0_8, %c0_9] : memref<20x3xf32, #tpu.memory_space<vmem>>, vector<20x3xf32>
    %c0_10 = arith.constant 0 : index
    %c0_11 = arith.constant 0 : index
    %7 = vector.load %arg5[%c0_10, %c0_11] : memref<20x1xf32, #tpu.memory_space<vmem>>, vector<20x1xf32>
    %c0_12 = arith.constant 0 : index
    %c0_13 = arith.constant 0 : index
    %8 = vector.load %arg6[%c0_12, %c0_13] : memref<20x20xf32, #tpu.memory_space<vmem>>, vector<20x20xf32>
    %c0_14 = arith.constant 0 : index
    %c0_15 = arith.constant 0 : index
    %9 = vector.load %arg7[%c0_14, %c0_15] : memref<20x1xf32, #tpu.memory_space<vmem>>, vector<20x1xf32>
    %c0_16 = arith.constant 0 : index
    %c0_17 = arith.constant 0 : index
    %10 = vector.load %arg8[%c0_16, %c0_17] : memref<1x20xf32, #tpu.memory_space<vmem>>, vector<1x20xf32>
    %c0_18 = arith.constant 0 : index
    %c0_19 = arith.constant 0 : index
    %11 = vector.load %arg9[%c0_18, %c0_19] : memref<1x1xf32, #tpu.memory_space<vmem>>, vector<1x1xf32>
    %12 = vector.extract_strided_slice %6 {offsets = [0, 0], sizes = [20, 1], strides = [1, 1]} : vector<20x3xf32> to vector<20x1xf32>
    %13 = vector.broadcast %12 : vector<20x1xf32> to vector<20x128xf32>
    %14 = vector.broadcast %1 : vector<1x128xf32> to vector<20x128xf32>
    %15 = arith.mulf %13, %14 : vector<20x128xf32>
    %16 = vector.extract_strided_slice %6 {offsets = [0, 1], sizes = [20, 1], strides = [1, 1]} : vector<20x3xf32> to vector<20x1xf32>
    %17 = vector.broadcast %16 : vector<20x1xf32> to vector<20x128xf32>
    %18 = vector.broadcast %3 : vector<1x128xf32> to vector<20x128xf32>
    %19 = arith.mulf %17, %18 : vector<20x128xf32>
    %20 = arith.addf %15, %19 : vector<20x128xf32>
    %21 = vector.extract_strided_slice %6 {offsets = [0, 2], sizes = [20, 1], strides = [1, 1]} : vector<20x3xf32> to vector<20x1xf32>
    %22 = vector.broadcast %21 : vector<20x1xf32> to vector<20x128xf32>
    %23 = vector.broadcast %5 : vector<1x128xf32> to vector<20x128xf32>
    %24 = arith.mulf %22, %23 : vector<20x128xf32>
    %25 = arith.addf %20, %24 : vector<20x128xf32>
    %26 = vector.broadcast %7 : vector<20x1xf32> to vector<20x128xf32>
    %27 = arith.addf %25, %26 : vector<20x128xf32>
    %cst = arith.constant 0.000000e+00 : f32
    %28 = vector.broadcast %cst : f32 to vector<20x128xf32>
    %29 = arith.maximumf %27, %28 : vector<20x128xf32>
    %cst_20 = arith.constant dense<0.000000e+00> : vector<20x128xf32>
    %30 = tpu.matmul %8, %29, %cst_20 {dimension_numbers = #tpu.dot_dimension_numbers<[1], [0], [0], [1], [0, 0, 1, 1], [], []>} : vector<20x20xf32>, vector<20x128xf32>, vector<20x128xf32> -> vector<20x128xf32>
    %31 = vector.broadcast %9 : vector<20x1xf32> to vector<20x128xf32>
    %32 = arith.addf %30, %31 : vector<20x128xf32>
    %cst_21 = arith.constant 0.000000e+00 : f32
    %33 = vector.broadcast %cst_21 : f32 to vector<20x128xf32>
    %34 = arith.maximumf %32, %33 : vector<20x128xf32>
    %cst_22 = arith.constant dense<0.000000e+00> : vector<20x128xf32>
    %35 = tpu.matmul %8, %34, %cst_22 {dimension_numbers = #tpu.dot_dimension_numbers<[1], [0], [0], [1], [0, 0, 1, 1], [], []>} : vector<20x20xf32>, vector<20x128xf32>, vector<20x128xf32> -> vector<20x128xf32>
    %36 = vector.broadcast %9 : vector<20x1xf32> to vector<20x128xf32>
    %37 = arith.addf %35, %36 : vector<20x128xf32>
    %cst_23 = arith.constant 0.000000e+00 : f32
    %38 = vector.broadcast %cst_23 : f32 to vector<20x128xf32>
    %39 = arith.maximumf %37, %38 : vector<20x128xf32>
    %cst_24 = arith.constant dense<0.000000e+00> : vector<20x128xf32>
    %40 = tpu.matmul %8, %39, %cst_24 {dimension_numbers = #tpu.dot_dimension_numbers<[1], [0], [0], [1], [0, 0, 1, 1], [], []>} : vector<20x20xf32>, vector<20x128xf32>, vector<20x128xf32> -> vector<20x128xf32>
    %41 = vector.broadcast %9 : vector<20x1xf32> to vector<20x128xf32>
    %42 = arith.addf %40, %41 : vector<20x128xf32>
    %cst_25 = arith.constant 0.000000e+00 : f32
    %43 = vector.broadcast %cst_25 : f32 to vector<20x128xf32>
    %44 = arith.maximumf %42, %43 : vector<20x128xf32>
    %cst_26 = arith.constant dense<0.000000e+00> : vector<20x128xf32>
    %45 = tpu.matmul %8, %44, %cst_26 {dimension_numbers = #tpu.dot_dimension_numbers<[1], [0], [0], [1], [0, 0, 1, 1], [], []>} : vector<20x20xf32>, vector<20x128xf32>, vector<20x128xf32> -> vector<20x128xf32>
    %46 = vector.broadcast %9 : vector<20x1xf32> to vector<20x128xf32>
    %47 = arith.addf %45, %46 : vector<20x128xf32>
    %cst_27 = arith.constant 0.000000e+00 : f32
    %48 = vector.broadcast %cst_27 : f32 to vector<20x128xf32>
    %49 = arith.maximumf %47, %48 : vector<20x128xf32>
    %cst_28 = arith.constant dense<0.000000e+00> : vector<20x128xf32>
    %50 = tpu.matmul %8, %49, %cst_28 {dimension_numbers = #tpu.dot_dimension_numbers<[1], [0], [0], [1], [0, 0, 1, 1], [], []>} : vector<20x20xf32>, vector<20x128xf32>, vector<20x128xf32> -> vector<20x128xf32>
    %51 = vector.broadcast %9 : vector<20x1xf32> to vector<20x128xf32>
    %52 = arith.addf %50, %51 : vector<20x128xf32>
    %cst_29 = arith.constant 0.000000e+00 : f32
    %53 = vector.broadcast %cst_29 : f32 to vector<20x128xf32>
    %54 = arith.maximumf %52, %53 : vector<20x128xf32>
    %cst_30 = arith.constant dense<0.000000e+00> : vector<20x128xf32>
    %55 = tpu.matmul %8, %54, %cst_30 {dimension_numbers = #tpu.dot_dimension_numbers<[1], [0], [0], [1], [0, 0, 1, 1], [], []>} : vector<20x20xf32>, vector<20x128xf32>, vector<20x128xf32> -> vector<20x128xf32>
    %56 = vector.broadcast %9 : vector<20x1xf32> to vector<20x128xf32>
    %57 = arith.addf %55, %56 : vector<20x128xf32>
    %cst_31 = arith.constant 0.000000e+00 : f32
    %58 = vector.broadcast %cst_31 : f32 to vector<20x128xf32>
    %59 = arith.maximumf %57, %58 : vector<20x128xf32>
    %cst_32 = arith.constant dense<0.000000e+00> : vector<20x128xf32>
    %60 = tpu.matmul %8, %59, %cst_32 {dimension_numbers = #tpu.dot_dimension_numbers<[1], [0], [0], [1], [0, 0, 1, 1], [], []>} : vector<20x20xf32>, vector<20x128xf32>, vector<20x128xf32> -> vector<20x128xf32>
    %61 = vector.broadcast %9 : vector<20x1xf32> to vector<20x128xf32>
    %62 = arith.addf %60, %61 : vector<20x128xf32>
    %63 = math.tanh %62 : vector<20x128xf32>
    %cst_33 = arith.constant dense<0.000000e+00> : vector<1x128xf32>
    %64 = tpu.matmul %10, %63, %cst_33 {dimension_numbers = #tpu.dot_dimension_numbers<[1], [0], [0], [1], [0, 0, 1, 1], [], []>} : vector<1x20xf32>, vector<20x128xf32>, vector<1x128xf32> -> vector<1x128xf32>
    %65 = vector.broadcast %11 : vector<1x1xf32> to vector<1x128xf32>
    %66 = arith.addf %64, %65 : vector<1x128xf32>
    %c0_34 = arith.constant 0 : index
    %c0_35 = arith.constant 0 : index
    %c0_36 = arith.constant 0 : index
    %67 = vector.load %arg10[%c0_34, %c0_35, %c0_36] : memref<1x1x128xf32, #tpu.memory_space<vmem>>, vector<1x1x128xf32>
    %68 = vector.shape_cast %67 : vector<1x1x128xf32> to vector<1x128xf32>
    %69 = vector.shape_cast %66 : vector<1x128xf32> to vector<1x1x128xf32>
    tpu.vector_store %arg10[%c0_34, %c0_35, %c0_36], %69 {strides = array<i32>} : memref<1x1x128xf32, #tpu.memory_space<vmem>>, vector<1x1x128xf32>,
    return
  }
  func.func @transform_0(%arg0: i32) -> (i32, i32, i32) {
    %c0_i32 = arith.constant 0 : i32
    %c0_i32_0 = arith.constant 0 : i32
    %c0_i32_1 = arith.constant 0 : i32
    return %arg0, %c0_i32, %c0_i32_0 : i32, i32, i32
  }
  func.func @transform_1(%arg0: i32) -> (i32, i32, i32) {
    %c0_i32 = arith.constant 0 : i32
    %c0_i32_0 = arith.constant 0 : i32
    %c0_i32_1 = arith.constant 0 : i32
    return %arg0, %c0_i32, %c0_i32_0 : i32, i32, i32
  }
  func.func @transform_2(%arg0: i32) -> (i32, i32, i32) {
    %c0_i32 = arith.constant 0 : i32
    %c0_i32_0 = arith.constant 0 : i32
    %c0_i32_1 = arith.constant 0 : i32
    return %arg0, %c0_i32, %c0_i32_0 : i32, i32, i32
  }
  func.func @transform_3(%arg0: i32) -> (i32, i32) {
    %c0_i32 = arith.constant 0 : i32
    %c0_i32_0 = arith.constant 0 : i32
    %c0_i32_1 = arith.constant 0 : i32
    return %c0_i32, %c0_i32_0 : i32, i32
  }
  func.func @transform_4(%arg0: i32) -> (i32, i32) {
    %c0_i32 = arith.constant 0 : i32
    %c0_i32_0 = arith.constant 0 : i32
    %c0_i32_1 = arith.constant 0 : i32
    return %c0_i32, %c0_i32_0 : i32, i32
  }
  func.func @transform_5(%arg0: i32) -> (i32, i32) {
    %c0_i32 = arith.constant 0 : i32
    %c0_i32_0 = arith.constant 0 : i32
    %c0_i32_1 = arith.constant 0 : i32
    return %c0_i32, %c0_i32_0 : i32, i32
  }
  func.func @transform_6(%arg0: i32) -> (i32, i32) {
    %c0_i32 = arith.constant 0 : i32
    %c0_i32_0 = arith.constant 0 : i32
    %c0_i32_1 = arith.constant 0 : i32
    return %c0_i32, %c0_i32_0 : i32, i32
  }
  func.func @transform_7(%arg0: i32) -> (i32, i32) {
    %c0_i32 = arith.constant 0 : i32
    %c0_i32_0 = arith.constant 0 : i32
    %c0_i32_1 = arith.constant 0 : i32
    return %c0_i32, %c0_i32_0 : i32, i32
  }
  func.func @transform_8(%arg0: i32) -> (i32, i32) {
    %c0_i32 = arith.constant 0 : i32
    %c0_i32_0 = arith.constant 0 : i32
    %c0_i32_1 = arith.constant 0 : i32
    return %c0_i32, %c0_i32_0 : i32, i32
  }
  func.func @transform_9(%arg0: i32) -> (i32, i32, i32) {
    %c0_i32 = arith.constant 0 : i32
    %c0_i32_0 = arith.constant 0 : i32
    %c0_i32_1 = arith.constant 0 : i32
    return %arg0, %c0_i32, %c0_i32_0 : i32, i32, i32
  }
}

</mosaic_0001>

<llo_original>
// kernel: tpu_custom_call.1
$region0: #{tpu_custom_call.1}
  #allocation0 [shape = 'u32[]', space=smem, size = 0x4, offset = 0x4, fixed_abs, tag = 'smem constant byte address 0x4 - core index']
  #allocation1 [shape = 'u32[144,128]{1,0:T(1,128)}', space=vmem, size = 0x12000, scoped, tag = 'internal scratch']
  #allocation2 [shape = 'f32[1,1]{1,0:T(1,128)S(1)}', space=vmem, size = 0x200, scoped, tag = 'scoped memory for tpu_custom_call.1']
  %s0 = inlined_call_operand.vmem [shape: f32[2,1,128], index: 0, kind: input, shape index: {}]
  %s1 = inlined_call_operand.vmem [shape: f32[2,1,128], index: 1, kind: input, shape index: {}]
  %s2 = inlined_call_operand.vmem [shape: f32[2,1,128], index: 2, kind: input, shape index: {}]
  %s3 = inlined_call_operand.vmem [shape: f32[20,3], index: 3, kind: input, shape index: {}]
  %s4 = inlined_call_operand.vmem [shape: f32[20,1], index: 4, kind: input, shape index: {}]
  %s5 = inlined_call_operand.vmem [shape: f32[20,20], index: 5, kind: input, shape index: {}]
  %s6 = inlined_call_operand.vmem [shape: f32[20,1], index: 6, kind: input, shape index: {}]
  %s7 = inlined_call_operand.vmem [shape: f32[1,20], index: 7, kind: input, shape index: {}]
  %s8 = inlined_call_operand.<no memory space> [shape: f32[1,1], index: 8, kind: input, shape index: {}]
  %s9 = inlined_call_operand.hbm [shape: f32[2,1,128], index: 9, kind: output, shape index: {}]
  %s10 = sld [smem:[#allocation0]]
  $region69: #{tpu_custom_call.1} parent=0
    _
  %s12 = ssub.s32 1, %s10
  %s13 = scalar_select 0, %s12, %s10
  %v14 = vstv %s8
  %15 = vst [vmem:[#allocation2] sm:$0x1] %v14
  $region1: #{tpu_custom_call.1} parent=0
    #allocation3 [shape = 'u8[1024]{0}', space=vmem, size = 0x400, scoped, tag = 'output window, operand 0']
    #allocation4 [shape = 's32[2]{0}', space=sflag, size = 0x8, scoped, tag = 'scoped memory for tpu_custom_call.1']
    %16 = vsyncpa [#allocation4], 0
    %s17 = scalar_lea.sflag [#allocation4], 1
    %18 = vsyncpa %s17, 0
    loop: start=0, step=1, limit=4
    $region2: #{tpu_custom_call.1} parent=1 // loop_pre_header
      _
    $region3: #{tpu_custom_call.1} parent=1 // loop_header
      %s20 = sphi 0, %s24
      %p21 = scmp.ge.s32.totalorder %s20, 4
      %s30 = sphi 0, %s32
      %s33 = sphi 0, %s30
      %s34 = sphi 0, %s33
      %s50 = sphi 0, %s34
      %s56 = sphi 0, %s58
      %s59 = sphi 0, %s56
      %s60 = sphi 0, %s59
      %s76 = sphi 0, %s60
      %s82 = sphi 0, %s84
      %s85 = sphi 0, %s82
      %s86 = sphi 0, %s85
      %s102 = sphi 0, %s86
      %s106 = sphi 0, %s106
      %s108 = sphi 0, %s106
      %s109 = sphi 0, %s108
      %s123 = sphi 0, %s109
      %s127 = sphi 0, %s127
      %s129 = sphi 0, %s127
      %s130 = sphi 0, %s129
      %s144 = sphi 0, %s130
      %s148 = sphi 0, %s148
      %s150 = sphi 0, %s148
      %s151 = sphi 0, %s150
      %s165 = sphi 0, %s151
      %s169 = sphi 0, %s169
      %s171 = sphi 0, %s169
      %s172 = sphi 0, %s171
      %s186 = sphi 0, %s172
      %s190 = sphi 0, %s190
      %s192 = sphi 0, %s190
      %s193 = sphi 0, %s192
      %s207 = sphi 0, %s193
      %s211 = sphi 0, %s211
      %s213 = sphi 0, %s211
      %s214 = sphi 0, %s213
      %s228 = sphi 0, %s214
      %s234 = sphi 0, %s236
      %s237 = sphi 0, %s234
      %s238 = sphi 0, %s237
      %s254 = sphi 0, %s238
    $region4: #{tpu_custom_call.1} parent=1 // loop_header_branch
      %23 = sbr.rel (%p21) target = $region8
    $region5: #{tpu_custom_call.1} parent=1 // loop_body
      %s25 = ssub.s32 %s20, 1
      %s26 = ssub.s32 %s20, 2
      %s27 = sadd.s32 %s20, 1
      %s28 = ssub.s32 %s20, %s27
      %p29 = scmp.eq.s32.totalorder %s28, 0
      %s31 = sadd.s32 %s30, 1
      %s32 = scalar_select %p29, %s30, %s31
      %p35 = pneg %p29
      %p36 = scmp.eq.s32.totalorder %s20, 1
      %p37 = por %p35, %p36
      %p38 = scmp.ne.s32.totalorder %s30, %s33
      %p39 = scmp.eq.s32.totalorder %s20, 0
      %p40 = por %p38, %p39
      %p41 = scmp.ne.s32.totalorder %s30, %s33
      %p42 = scmp.eq.s32.totalorder %s25, 1
      %p43 = por %p41, %p42
      %p44 = scmp.ne.s32.totalorder %s33, %s34
      %p45 = scmp.eq.s32.totalorder %s25, 0
      %p46 = por %p44, %p45
      %p47 = scmp.ne.s32.totalorder %s33, %s34
      %p48 = scmp.eq.s32.totalorder %s26, 1
      %p49 = por %p47, %p48
      %p51 = scmp.ne.s32.totalorder %s34, %s50
      %p52 = scmp.eq.s32.totalorder %s26, 0
      %p53 = por %p51, %p52
      %s54 = ssub.s32 %s20, %s27
      %p55 = scmp.eq.s32.totalorder %s54, 0
      %s57 = sadd.s32 %s56, 1
      %s58 = scalar_select %p55, %s56, %s57
      %p61 = pneg %p55
      %p62 = scmp.eq.s32.totalorder %s20, 1
      %p63 = por %p61, %p62
      %p64 = scmp.ne.s32.totalorder %s56, %s59
      %p65 = scmp.eq.s32.totalorder %s20, 0
      %p66 = por %p64, %p65
      %p67 = scmp.ne.s32.totalorder %s56, %s59
      %p68 = scmp.eq.s32.totalorder %s25, 1
      %p69 = por %p67, %p68
      %p70 = scmp.ne.s32.totalorder %s59, %s60
      %p71 = scmp.eq.s32.totalorder %s25, 0
      %p72 = por %p70, %p71
      %p73 = scmp.ne.s32.totalorder %s59, %s60
      %p74 = scmp.eq.s32.totalorder %s26, 1
      %p75 = por %p73, %p74
      %p77 = scmp.ne.s32.totalorder %s60, %s76
      %p78 = scmp.eq.s32.totalorder %s26, 0
      %p79 = por %p77, %p78
      %s80 = ssub.s32 %s20, %s27
      %p81 = scmp.eq.s32.totalorder %s80, 0
      %s83 = sadd.s32 %s82, 1
      %s84 = scalar_select %p81, %s82, %s83
      %p87 = pneg %p81
      %p88 = scmp.eq.s32.totalorder %s20, 1
      %p89 = por %p87, %p88
      %p90 = scmp.ne.s32.totalorder %s82, %s85
      %p91 = scmp.eq.s32.totalorder %s20, 0
      %p92 = por %p90, %p91
      %p93 = scmp.ne.s32.totalorder %s82, %s85
      %p94 = scmp.eq.s32.totalorder %s25, 1
      %p95 = por %p93, %p94
      %p96 = scmp.ne.s32.totalorder %s85, %s86
      %p97 = scmp.eq.s32.totalorder %s25, 0
      %p98 = por %p96, %p97
      %p99 = scmp.ne.s32.totalorder %s85, %s86
      %p100 = scmp.eq.s32.totalorder %s26, 1
      %p101 = por %p99, %p100
      %p103 = scmp.ne.s32.totalorder %s86, %s102
      %p104 = scmp.eq.s32.totalorder %s26, 0
      %p105 = por %p103, %p104
      %s107 = sadd.s32 %s106, 1
      %p110 = scmp.eq.s32.totalorder %s20, 1
      %p111 = scmp.ne.s32.totalorder %s106, %s108
      %p112 = scmp.eq.s32.totalorder %s20, 0
      %p113 = por %p111, %p112
      %p114 = scmp.ne.s32.totalorder %s106, %s108
      %p115 = scmp.eq.s32.totalorder %s25, 1
      %p116 = por %p114, %p115
      %p117 = scmp.ne.s32.totalorder %s108, %s109
      %p118 = scmp.eq.s32.totalorder %s25, 0
      %p119 = por %p117, %p118
      %p120 = scmp.ne.s32.totalorder %s108, %s109
      %p121 = scmp.eq.s32.totalorder %s26, 1
      %p122 = por %p120, %p121
      %p124 = scmp.ne.s32.totalorder %s109, %s123
      %p125 = scmp.eq.s32.totalorder %s26, 0
      %p126 = por %p124, %p125
      %s128 = sadd.s32 %s127, 1
      %p131 = scmp.eq.s32.totalorder %s20, 1
      %p132 = scmp.ne.s32.totalorder %s127, %s129
      %p133 = scmp.eq.s32.totalorder %s20, 0
      %p134 = por %p132, %p133
      %p135 = scmp.ne.s32.totalorder %s127, %s129
      %p136 = scmp.eq.s32.totalorder %s25, 1
      %p137 = por %p135, %p136
      %p138 = scmp.ne.s32.totalorder %s129, %s130
      %p139 = scmp.eq.s32.totalorder %s25, 0
      %p140 = por %p138, %p139
      %p141 = scmp.ne.s32.totalorder %s129, %s130
      %p142 = scmp.eq.s32.totalorder %s26, 1
      %p143 = por %p141, %p142
      %p145 = scmp.ne.s32.totalorder %s130, %s144
      %p146 = scmp.eq.s32.totalorder %s26, 0
      %p147 = por %p145, %p146
      %s149 = sadd.s32 %s148, 1
      %p152 = scmp.eq.s32.totalorder %s20, 1
      %p153 = scmp.ne.s32.totalorder %s148, %s150
      %p154 = scmp.eq.s32.totalorder %s20, 0
      %p155 = por %p153, %p154
      %p156 = scmp.ne.s32.totalorder %s148, %s150
      %p157 = scmp.eq.s32.totalorder %s25, 1
      %p158 = por %p156, %p157
      %p159 = scmp.ne.s32.totalorder %s150, %s151
      %p160 = scmp.eq.s32.totalorder %s25, 0
      %p161 = por %p159, %p160
      %p162 = scmp.ne.s32.totalorder %s150, %s151
      %p163 = scmp.eq.s32.totalorder %s26, 1
      %p164 = por %p162, %p163
      %p166 = scmp.ne.s32.totalorder %s151, %s165
      %p167 = scmp.eq.s32.totalorder %s26, 0
      %p168 = por %p166, %p167
      %s170 = sadd.s32 %s169, 1
      %p173 = scmp.eq.s32.totalorder %s20, 1
      %p174 = scmp.ne.s32.totalorder %s169, %s171
      %p175 = scmp.eq.s32.totalorder %s20, 0
      %p176 = por %p174, %p175
      %p177 = scmp.ne.s32.totalorder %s169, %s171
      %p178 = scmp.eq.s32.totalorder %s25, 1
      %p179 = por %p177, %p178
      %p180 = scmp.ne.s32.totalorder %s171, %s172
      %p181 = scmp.eq.s32.totalorder %s25, 0
      %p182 = por %p180, %p181
      %p183 = scmp.ne.s32.totalorder %s171, %s172
      %p184 = scmp.eq.s32.totalorder %s26, 1
      %p185 = por %p183, %p184
      %p187 = scmp.ne.s32.totalorder %s172, %s186
      %p188 = scmp.eq.s32.totalorder %s26, 0
      %p189 = por %p187, %p188
      %s191 = sadd.s32 %s190, 1
      %p194 = scmp.eq.s32.totalorder %s20, 1
      %p195 = scmp.ne.s32.totalorder %s190, %s192
      %p196 = scmp.eq.s32.totalorder %s20, 0
      %p197 = por %p195, %p196
      %p198 = scmp.ne.s32.totalorder %s190, %s192
      %p199 = scmp.eq.s32.totalorder %s25, 1
      %p200 = por %p198, %p199
      %p201 = scmp.ne.s32.totalorder %s192, %s193
      %p202 = scmp.eq.s32.totalorder %s25, 0
      %p203 = por %p201, %p202
      %p204 = scmp.ne.s32.totalorder %s192, %s193
      %p205 = scmp.eq.s32.totalorder %s26, 1
      %p206 = por %p204, %p205
      %p208 = scmp.ne.s32.totalorder %s193, %s207
      %p209 = scmp.eq.s32.totalorder %s26, 0
      %p210 = por %p208, %p209
      %s212 = sadd.s32 %s211, 1
      %p215 = scmp.eq.s32.totalorder %s20, 1
      %p216 = scmp.ne.s32.totalorder %s211, %s213
      %p217 = scmp.eq.s32.totalorder %s20, 0
      %p218 = por %p216, %p217
      %p219 = scmp.ne.s32.totalorder %s211, %s213
      %p220 = scmp.eq.s32.totalorder %s25, 1
      %p221 = por %p219, %p220
      %p222 = scmp.ne.s32.totalorder %s213, %s214
      %p223 = scmp.eq.s32.totalorder %s25, 0
      %p224 = por %p222, %p223
      %p225 = scmp.ne.s32.totalorder %s213, %s214
      %p226 = scmp.eq.s32.totalorder %s26, 1
      %p227 = por %p225, %p226
      %p229 = scmp.ne.s32.totalorder %s214, %s228
      %p230 = scmp.eq.s32.totalorder %s26, 0
      %p231 = por %p229, %p230
      %s232 = ssub.s32 %s20, %s27
      %p233 = scmp.eq.s32.totalorder %s232, 0
      %s235 = sadd.s32 %s234, 1
      %s236 = scalar_select %p233, %s234, %s235
      %p239 = pneg %p233
      %p240 = scmp.eq.s32.totalorder %s20, 1
      %p241 = por %p239, %p240
      %p242 = scmp.ne.s32.totalorder %s234, %s237
      %p243 = scmp.eq.s32.totalorder %s20, 0
      %p244 = por %p242, %p243
      %p245 = scmp.ne.s32.totalorder %s234, %s237
      %p246 = scmp.eq.s32.totalorder %s25, 1
      %p247 = por %p245, %p246
      %p248 = scmp.ne.s32.totalorder %s237, %s238
      %p249 = scmp.eq.s32.totalorder %s25, 0
      %p250 = por %p248, %p249
      %p251 = scmp.ne.s32.totalorder %s237, %s238
      %p252 = scmp.eq.s32.totalorder %s26, 1
      %p253 = por %p251, %p252
      %p255 = scmp.ne.s32.totalorder %s238, %s254
      %p256 = scmp.eq.s32.totalorder %s26, 0
      %p257 = por %p255, %p256
      %p258 = scmp.le.s32.totalorder 1, %s20
      %p259 = scmp.lt.s32.totalorder %s20, 3
      %p260 = pnand %p258, %p259
      %p261 = pneg %p260
      // Predicated region
      $region9: #{tpu_custom_call.1} parent=5 // pred_check
        _
      $region10: #{tpu_custom_call.1} parent=5 // pred_check_branch
        %263 = sbr.rel (%p260) target = $region12
      $region11: #{tpu_custom_call.1} parent=5 // pred_region
        %s264 = ssub.s32 %s20, 1
        // Predicated region
        $region13: #{tpu_custom_call.1} parent=11 // pred_check
          %p265 = pneg %p119
        $region14: #{tpu_custom_call.1} parent=11 // pred_check_branch
          %267 = sbr.rel (%p265) target = $region16
        $region15: #{tpu_custom_call.1} parent=11 // pred_region
          _
        $region16: #{tpu_custom_call.1} parent=11 // pred_fallthru
          _
        // Predicated region
        $region17: #{tpu_custom_call.1} parent=11 // pred_check
          %p268 = pneg %p140
        $region18: #{tpu_custom_call.1} parent=11 // pred_check_branch
          %270 = sbr.rel (%p268) target = $region20
        $region19: #{tpu_custom_call.1} parent=11 // pred_region
          _
        $region20: #{tpu_custom_call.1} parent=11 // pred_fallthru
          _
        // Predicated region
        $region21: #{tpu_custom_call.1} parent=11 // pred_check
          %p271 = pneg %p161
        $region22: #{tpu_custom_call.1} parent=11 // pred_check_branch
          %273 = sbr.rel (%p271) target = $region24
        $region23: #{tpu_custom_call.1} parent=11 // pred_region
          _
        $region24: #{tpu_custom_call.1} parent=11 // pred_fallthru
          _
        // Predicated region
        $region25: #{tpu_custom_call.1} parent=11 // pred_check
          %p274 = pneg %p182
        $region26: #{tpu_custom_call.1} parent=11 // pred_check_branch
          %276 = sbr.rel (%p274) target = $region28
        $region27: #{tpu_custom_call.1} parent=11 // pred_region
          _
        $region28: #{tpu_custom_call.1} parent=11 // pred_fallthru
          _
        // Predicated region
        $region29: #{tpu_custom_call.1} parent=11 // pred_check
          %p277 = pneg %p203
        $region30: #{tpu_custom_call.1} parent=11 // pred_check_branch
          %279 = sbr.rel (%p277) target = $region32
        $region31: #{tpu_custom_call.1} parent=11 // pred_region
          _
        $region32: #{tpu_custom_call.1} parent=11 // pred_fallthru
          _
        // Predicated region
        $region33: #{tpu_custom_call.1} parent=11 // pred_check
          %p280 = pneg %p224
        $region34: #{tpu_custom_call.1} parent=11 // pred_check_branch
          %282 = sbr.rel (%p280) target = $region36
        $region35: #{tpu_custom_call.1} parent=11 // pred_region
          _
        $region36: #{tpu_custom_call.1} parent=11 // pred_fallthru
          _
      $region12: #{tpu_custom_call.1} parent=5 // pred_fallthru
        _
      %p283 = scmp.lt.s32.totalorder %s20, 2
      // Predicated region
      $region37: #{tpu_custom_call.1} parent=5 // pred_check
        %p284 = pneg %p283
      $region38: #{tpu_custom_call.1} parent=5 // pred_check_branch
        %286 = sbr.rel (%p284) target = $region40
      $region39: #{tpu_custom_call.1} parent=5 // pred_region
        // Predicated region
        $region41: #{tpu_custom_call.1} parent=39 // pred_check
          %p287 = pneg %p40
        $region42: #{tpu_custom_call.1} parent=39 // pred_check_branch
          %289 = sbr.rel (%p287) target = $region44
        $region43: #{tpu_custom_call.1} parent=39 // pred_region
          %p290 = scmp.lt.s32.totalorder %s20, 1
          %s291 = scalar_select %p290, %s20, 1
          %s292 = scalar_lea.vmem %s0, %s291
        $region44: #{tpu_custom_call.1} parent=39 // pred_fallthru
          _
        // Predicated region
        $region45: #{tpu_custom_call.1} parent=39 // pred_check
          %p293 = pneg %p66
        $region46: #{tpu_custom_call.1} parent=39 // pred_check_branch
          %295 = sbr.rel (%p293) target = $region48
        $region47: #{tpu_custom_call.1} parent=39 // pred_region
          %p296 = scmp.lt.s32.totalorder %s20, 1
          %s297 = scalar_select %p296, %s20, 1
          %s298 = scalar_lea.vmem %s1, %s297
        $region48: #{tpu_custom_call.1} parent=39 // pred_fallthru
          _
        // Predicated region
        $region49: #{tpu_custom_call.1} parent=39 // pred_check
          %p299 = pneg %p92
        $region50: #{tpu_custom_call.1} parent=39 // pred_check_branch
          %301 = sbr.rel (%p299) target = $region52
        $region51: #{tpu_custom_call.1} parent=39 // pred_region
          %p302 = scmp.lt.s32.totalorder %s20, 1
          %s303 = scalar_select %p302, %s20, 1
          %s304 = scalar_lea.vmem %s2, %s303
        $region52: #{tpu_custom_call.1} parent=39 // pred_fallthru
          _
      $region40: #{tpu_custom_call.1} parent=5 // pred_fallthru
        _
      %p305 = scmp.le.s32.totalorder 1, %s20
      %p306 = scmp.lt.s32.totalorder %s20, 3
      %p307 = pnand %p305, %p306
      %p308 = pneg %p307
      // Predicated region
      $region53: #{tpu_custom_call.1} parent=5 // pred_check
        _
      $region54: #{tpu_custom_call.1} parent=5 // pred_check_branch
        %310 = sbr.rel (%p307) target = $region56
      $region55: #{tpu_custom_call.1} parent=5 // pred_region
        %s311 = ssub.s32 %s20, 1
        %p312 = scmp.lt.s32.totalorder %s25, 1
        %s313 = scalar_select %p312, %s25, 1
        %s314 = scalar_lea.vmem %s0, %s313
        %p315 = pneg %p46
        %p316 = pneg %p43
        %p317 = scmp.lt.s32.totalorder %s25, 1
        %s318 = scalar_select %p317, %s25, 1
        %s319 = scalar_lea.vmem %s1, %s318
        %p320 = pneg %p72
        %p321 = pneg %p69
        %p322 = scmp.lt.s32.totalorder %s25, 1
        %s323 = scalar_select %p322, %s25, 1
        %s324 = scalar_lea.vmem %s2, %s323
        %p325 = pneg %p98
        %p326 = pneg %p95
        %p327 = pneg %p119
        %p328 = pneg %p116
        %p329 = pneg %p140
        %p330 = pneg %p137
        %p331 = pneg %p161
        %p332 = pneg %p158
        %p333 = pneg %p182
        %p334 = pneg %p179
        %p335 = pneg %p203
        %p336 = pneg %p200
        %p337 = pneg %p224
        %p338 = pneg %p221
        %p339 = pneg %p250
        %p340 = pneg %p247
        %s341 = sand.u32 %s237, 1
        %s342 = scalar_lea.sflag [#allocation4], %s341
        %s343 = sand.u32 %s237, 1
        %s344 = scalar_lea.vmem [#allocation3], %s343
        %p345 = scmp.lt.s32.totalorder %s25, 1
        %s346 = scalar_select %p345, %s25, 1
        %s347 = scalar_lea.vmem %s0, %s346
        %p348 = scmp.lt.s32.totalorder %s25, 1
        %s349 = scalar_select %p348, %s25, 1
        %s350 = scalar_lea.vmem %s1, %s349
        %p351 = scmp.lt.s32.totalorder %s25, 1
        %s352 = scalar_select %p351, %s25, 1
        %s353 = scalar_lea.vmem %s2, %s352
        %v354 = vld [vmem:[%s347] sm:$0x1]
        %v355 = vld [vmem:[%s350] sm:$0x1]
        %v356 = vld [vmem:[%s353] sm:$0x1]
        %v357 = vld [vmem:[%s3] sm:$0xff]
        %v358 = vld [vmem:[%s3 + $0x8] sm:$0xff]
        %v359 = vld [vmem:[%s3 + $0x10] sm:$0xf]
        %v360 = vld [vmem:[%s4] sm:$0xff]
        %v361 = vld [vmem:[%s4 + $0x8] sm:$0xff]
        %v362 = vld [vmem:[%s4 + $0x10] sm:$0xf]
        %v363 = vld [vmem:[%s5] sm:$0xff]
        %v364 = vld [vmem:[%s5 + $0x8] sm:$0xff]
        %v365 = vld [vmem:[%s5 + $0x10] sm:$0xf]
        %v366 = vld [vmem:[%s6] sm:$0xff]
        %v367 = vld [vmem:[%s6 + $0x8] sm:$0xff]
        %v368 = vld [vmem:[%s6 + $0x10] sm:$0xf]
        %v369 = vld [vmem:[%s7] sm:$0x1]
        %v370 = vld [vmem:[#allocation2] sm:$0x1]
        %372 = vset.pattern.permute.xlu0 0
        %373 = vperm.xlu0 %372, %v357
        %v374 = vpop.permute.xlu0 %373
        %377 = vset.pattern.permute.xlu0 0
        %378 = vperm.xlu0 %377, %v358
        %v379 = vpop.permute.xlu0 %378
        %382 = vset.pattern.permute.xlu0 0
        %383 = vperm.xlu0 %382, %v359
        %v384 = vpop.permute.xlu0 %383
        %v387 = vlaneseq
        %v388 = vshrl.u32 %v387, 7
        %v389 = vsub.s32 0, %v388
        %v390 = vrot.slane %v354, %v389
        %v392 = vmul.f32 %v374, %v390
        %v393 = vmul.f32 %v379, %v390
        %v394 = vmul.f32 %v384, %v390
        %395 = vset.pattern.permute.xlu0 1
        %396 = vperm.xlu0 %395, %v357
        %v397 = vpop.permute.xlu0 %396
        %399 = vset.pattern.permute.xlu0 1
        %400 = vperm.xlu0 %399, %v358
        %v401 = vpop.permute.xlu0 %400
        %403 = vset.pattern.permute.xlu0 1
        %404 = vperm.xlu0 %403, %v359
        %v405 = vpop.permute.xlu0 %404
        %v408 = vlaneseq
        %v409 = vshrl.u32 %v408, 7
        %v410 = vsub.s32 0, %v409
        %v411 = vrot.slane %v355, %v410
        %v413 = vmul.f32 %v397, %v411
        %v414 = vmul.f32 %v401, %v411
        %v415 = vmul.f32 %v405, %v411
        %v416 = vadd.f32 %v392, %v413
        %v417 = vadd.f32 %v393, %v414
        %v418 = vadd.f32 %v394, %v415
        %419 = vset.pattern.permute.xlu0 2
        %420 = vperm.xlu0 %419, %v357
        %v421 = vpop.permute.xlu0 %420
        %423 = vset.pattern.permute.xlu0 2
        %424 = vperm.xlu0 %423, %v358
        %v425 = vpop.permute.xlu0 %424
        %427 = vset.pattern.permute.xlu0 2
        %428 = vperm.xlu0 %427, %v359
        %v429 = vpop.permute.xlu0 %428
        %v432 = vlaneseq
        %v433 = vshrl.u32 %v432, 7
        %v434 = vsub.s32 0, %v433
        %v435 = vrot.slane %v356, %v434
        %v437 = vmul.f32 %v421, %v435
        %v438 = vmul.f32 %v425, %v435
        %v439 = vmul.f32 %v429, %v435
        %v440 = vadd.f32 %v416, %v437
        %v441 = vadd.f32 %v417, %v438
        %v442 = vadd.f32 %v418, %v439
        %444 = vset.pattern.permute.xlu0 0
        %445 = vperm.xlu0 %444, %v360
        %v446 = vpop.permute.xlu0 %445
        %449 = vset.pattern.permute.xlu0 0
        %450 = vperm.xlu0 %449, %v361
        %v451 = vpop.permute.xlu0 %450
        %454 = vset.pattern.permute.xlu0 0
        %455 = vperm.xlu0 %454, %v362
        %v456 = vpop.permute.xlu0 %455
        %v458 = vadd.f32 %v440, %v446
        %v459 = vadd.f32 %v441, %v451
        %v460 = vadd.f32 %v442, %v456
        %v461 = vmax.f32 %v458, 0.0
        %v462 = vmax.f32 %v459, 0.0
        %v463 = vmax.f32 %v460, 0.0
        %465 = vset.pattern.permute.xlu0 0
        %466 = vperm.xlu0 %465, %v366
        %v467 = vpop.permute.xlu0 %466
        %470 = vset.pattern.permute.xlu0 0
        %471 = vperm.xlu0 %470, %v367
        %v472 = vpop.permute.xlu0 %471
        %475 = vset.pattern.permute.xlu0 0
        %476 = vperm.xlu0 %475, %v368
        %v477 = vpop.permute.xlu0 %476
        %vm479 = vcmask 162816
        %v481 = vsel %vm479, %v363, 0
        %v484 = vsel %vm479, %v364, 0
        %v487 = vsel %vm479, %v365, 0
        %vm489 = vcmask 1043456
        %v491 = vsel %vm489, %v463, 0
        %493 = vmatprep.subr.mxu0 0.0
        %494 = vmatpush1.msra.mxu0 %v461
        %495 = vmatprep.subr.mxu0 0.0
        %496 = vmatpush1.msra.mxu0 %v462
        %497 = vmatprep.subr.mxu0 0.0
        %498 = vmatpush1.msra.mxu0 %v491
        %499 = vmatprep.subr.mxu0 0.0
        %500 = vmatpush1.msra.mxu0 0.0
        %501 = vmatprep.subr.mxu0 0.0
        %502 = vmatpush1.msra.mxu0 0.0
        %503 = vmatprep.subr.mxu0 0.0
        %504 = vmatpush1.msra.mxu0 0.0
        %505 = vmatprep.subr.mxu0 0.0
        %506 = vmatpush1.msra.mxu0 0.0
        %507 = vmatprep.subr.mxu0 0.0
        %508 = vmatpush1.msra.mxu0 0.0
        %509 = vmatprep.subr.mxu0 0.0
        %510 = vmatpush1.msra.mxu0 0.0
        %511 = vmatprep.subr.mxu0 0.0
        %512 = vmatpush1.msra.mxu0 0.0
        %513 = vmatprep.subr.mxu0 0.0
        %514 = vmatpush1.msra.mxu0 0.0
        %515 = vmatprep.subr.mxu0 0.0
        %516 = vmatpush1.msra.mxu0 0.0
        %517 = vmatprep.subr.mxu0 0.0
        %518 = vmatpush1.msra.mxu0 0.0
        %519 = vmatprep.subr.mxu0 0.0
        %520 = vmatpush1.msra.mxu0 0.0
        %521 = vmatprep.subr.mxu0 0.0
        %522 = vmatpush1.msra.mxu0 0.0
        %523 = vmatprep.subr.mxu0 0.0
        %524 = vmatpush1.msra.mxu0 0.0
        %525 = vmatprep.subr.mxu0 0.0
        %526 = vmatpush1.msra.mxu0 0.0
        %527 = vmatprep.subr.mxu0 0.0
        %528 = vmatpush1.msra.mxu0 0.0
        %529 = vmatprep.subr.mxu0 0.0
        %530 = vmatpush1.msra.mxu0 0.0
        %531 = vmatprep.subr.mxu0 0.0
        %532 = vmatpush1.msra.mxu0 0.0
        %533 = vmatprep.subr.mxu0 0.0
        %534 = vmatpush1.msra.mxu0 0.0
        %535 = vmatprep.subr.mxu0 0.0
        %536 = vmatpush1.msra.mxu0 0.0
        %537 = vmatprep.subr.mxu0 0.0
        %538 = vmatpush1.msra.mxu0 0.0
        %539 = vmatprep.subr.mxu0 0.0
        %540 = vmatpush1.msra.mxu0 0.0
        %541 = vmatprep.subr.mxu0 0.0
        %542 = vmatpush1.msra.mxu0 0.0
        %543 = vmatprep.subr.mxu0 0.0
        %544 = vmatpush1.msra.mxu0 0.0
        %545 = vmatprep.subr.mxu0 0.0
        %546 = vmatpush1.msra.mxu0 0.0
        %547 = vmatprep.subr.mxu0 0.0
        %548 = vmatpush1.msra.mxu0 0.0
        %549 = vmatprep.subr.mxu0 0.0
        %550 = vmatpush1.msra.mxu0 0.0
        %551 = vmatprep.subr.mxu0 0.0
        %552 = vmatpush1.msra.mxu0 0.0
        %553 = vmatprep.subr.mxu0 0.0
        %554 = vmatpush1.msra.mxu0 0.0
        %555 = vmatprep.subr.mxu0 0.0
        %556 = vmatpush1.msra.mxu0 0.0
        %557 = vmatprep.mubr.f32.mxu0 0.0
        %558 = vmatmul.mubr.f32.gmra.mrb[0].mxu0 %v481
        %v559 = vpop.f32.mrb[0].mxu0
        %v560 = vadd.f32 %v467, %v559
        %v561 = vpop.f32.mrb[0].mxu0
        %562 = vmatprep.mubr.f32.mxu0 0.0
        %563 = vmatmul.mubr.f32.gmra.mrb[0].mxu0 %v484
        %v564 = vpop.f32.mrb[0].mxu0
        %v565 = vadd.f32 %v472, %v564
        %v566 = vpop.f32.mrb[0].mxu0
        %567 = vmatprep.mubr.f32.mxu0 0.0
        %568 = vmatmul.mubr.f32.gmra.mrb[0].mxu0 %v487
        %v569 = vpop.f32.mrb[0].mxu0
        %v570 = vadd.f32 %v477, %v569
        %v571 = vpop.f32.mrb[0].mxu0
        %572 = vdwg.mxu0
        %v573 = vmax.f32 %v560, 0.0
        %v574 = vmax.f32 %v565, 0.0
        %v575 = vmax.f32 %v570, 0.0
        %v577 = vsel %vm489, %v575, 0
        %579 = vmatprep.subr.mxu0 0.0
        %580 = vmatpush1.msra.mxu0 %v573
        %581 = vmatprep.subr.mxu0 0.0
        %582 = vmatpush1.msra.mxu0 %v574
        %583 = vmatprep.subr.mxu0 0.0
        %584 = vmatpush1.msra.mxu0 %v577
        %585 = vmatprep.subr.mxu0 0.0
        %586 = vmatpush1.msra.mxu0 0.0
        %587 = vmatprep.subr.mxu0 0.0
        %588 = vmatpush1.msra.mxu0 0.0
        %589 = vmatprep.subr.mxu0 0.0
        %590 = vmatpush1.msra.mxu0 0.0
        %591 = vmatprep.subr.mxu0 0.0
        %592 = vmatpush1.msra.mxu0 0.0
        %593 = vmatprep.subr.mxu0 0.0
        %594 = vmatpush1.msra.mxu0 0.0
        %595 = vmatprep.subr.mxu0 0.0
        %596 = vmatpush1.msra.mxu0 0.0
        %597 = vmatprep.subr.mxu0 0.0
        %598 = vmatpush1.msra.mxu0 0.0
        %599 = vmatprep.subr.mxu0 0.0
        %600 = vmatpush1.msra.mxu0 0.0
        %601 = vmatprep.subr.mxu0 0.0
        %602 = vmatpush1.msra.mxu0 0.0
        %603 = vmatprep.subr.mxu0 0.0
        %604 = vmatpush1.msra.mxu0 0.0
        %605 = vmatprep.subr.mxu0 0.0
        %606 = vmatpush1.msra.mxu0 0.0
        %607 = vmatprep.subr.mxu0 0.0
        %608 = vmatpush1.msra.mxu0 0.0
        %609 = vmatprep.subr.mxu0 0.0
        %610 = vmatpush1.msra.mxu0 0.0
        %611 = vmatprep.subr.mxu0 0.0
        %612 = vmatpush1.msra.mxu0 0.0
        %613 = vmatprep.subr.mxu0 0.0
        %614 = vmatpush1.msra.mxu0 0.0
        %615 = vmatprep.subr.mxu0 0.0
        %616 = vmatpush1.msra.mxu0 0.0
        %617 = vmatprep.subr.mxu0 0.0
        %618 = vmatpush1.msra.mxu0 0.0
        %619 = vmatprep.subr.mxu0 0.0
        %620 = vmatpush1.msra.mxu0 0.0
        %621 = vmatprep.subr.mxu0 0.0
        %622 = vmatpush1.msra.mxu0 0.0
        %623 = vmatprep.subr.mxu0 0.0
        %624 = vmatpush1.msra.mxu0 0.0
        %625 = vmatprep.subr.mxu0 0.0
        %626 = vmatpush1.msra.mxu0 0.0
        %627 = vmatprep.subr.mxu0 0.0
        %628 = vmatpush1.msra.mxu0 0.0
        %629 = vmatprep.subr.mxu0 0.0
        %630 = vmatpush1.msra.mxu0 0.0
        %631 = vmatprep.subr.mxu0 0.0
        %632 = vmatpush1.msra.mxu0 0.0
        %633 = vmatprep.subr.mxu0 0.0
        %634 = vmatpush1.msra.mxu0 0.0
        %635 = vmatprep.subr.mxu0 0.0
        %636 = vmatpush1.msra.mxu0 0.0
        %637 = vmatprep.subr.mxu0 0.0
        %638 = vmatpush1.msra.mxu0 0.0
        %639 = vmatprep.subr.mxu0 0.0
        %640 = vmatpush1.msra.mxu0 0.0
        %641 = vmatprep.subr.mxu0 0.0
        %642 = vmatpush1.msra.mxu0 0.0
        %643 = vmatprep.mubr.f32.mxu0 0.0
        %644 = vmatmul.mubr.f32.gmra.mrb[0].mxu0 %v481
        %v645 = vpop.f32.mrb[0].mxu0
        %v646 = vadd.f32 %v467, %v645
        %v647 = vpop.f32.mrb[0].mxu0
        %648 = vmatprep.mubr.f32.mxu0 0.0
        %649 = vmatmul.mubr.f32.gmra.mrb[0].mxu0 %v484
        %v650 = vpop.f32.mrb[0].mxu0
        %v651 = vadd.f32 %v472, %v650
        %v652 = vpop.f32.mrb[0].mxu0
        %653 = vmatprep.mubr.f32.mxu0 0.0
        %654 = vmatmul.mubr.f32.gmra.mrb[0].mxu0 %v487
        %v655 = vpop.f32.mrb[0].mxu0
        %v656 = vadd.f32 %v477, %v655
        %v657 = vpop.f32.mrb[0].mxu0
        %658 = vdwg.mxu0
        %v659 = vmax.f32 %v646, 0.0
        %v660 = vmax.f32 %v651, 0.0
        %v661 = vmax.f32 %v656, 0.0
        %v663 = vsel %vm489, %v661, 0
        %665 = vmatprep.subr.mxu0 0.0
        %666 = vmatpush1.msra.mxu0 %v659
        %667 = vmatprep.subr.mxu0 0.0
        %668 = vmatpush1.msra.mxu0 %v660
        %669 = vmatprep.subr.mxu0 0.0
        %670 = vmatpush1.msra.mxu0 %v663
        %671 = vmatprep.subr.mxu0 0.0
        %672 = vmatpush1.msra.mxu0 0.0
        %673 = vmatprep.subr.mxu0 0.0
        %674 = vmatpush1.msra.mxu0 0.0
        %675 = vmatprep.subr.mxu0 0.0
        %676 = vmatpush1.msra.mxu0 0.0
        %677 = vmatprep.subr.mxu0 0.0
        %678 = vmatpush1.msra.mxu0 0.0
        %679 = vmatprep.subr.mxu0 0.0
        %680 = vmatpush1.msra.mxu0 0.0
        %681 = vmatprep.subr.mxu0 0.0
        %682 = vmatpush1.msra.mxu0 0.0
        %683 = vmatprep.subr.mxu0 0.0
        %684 = vmatpush1.msra.mxu0 0.0
        %685 = vmatprep.subr.mxu0 0.0
        %686 = vmatpush1.msra.mxu0 0.0
        %687 = vmatprep.subr.mxu0 0.0
        %688 = vmatpush1.msra.mxu0 0.0
        %689 = vmatprep.subr.mxu0 0.0
        %690 = vmatpush1.msra.mxu0 0.0
        %691 = vmatprep.subr.mxu0 0.0
        %692 = vmatpush1.msra.mxu0 0.0
        %693 = vmatprep.subr.mxu0 0.0
        %694 = vmatpush1.msra.mxu0 0.0
        %695 = vmatprep.subr.mxu0 0.0
        %696 = vmatpush1.msra.mxu0 0.0
        %697 = vmatprep.subr.mxu0 0.0
        %698 = vmatpush1.msra.mxu0 0.0
        %699 = vmatprep.subr.mxu0 0.0
        %700 = vmatpush1.msra.mxu0 0.0
        %701 = vmatprep.subr.mxu0 0.0
        %702 = vmatpush1.msra.mxu0 0.0
        %703 = vmatprep.subr.mxu0 0.0
        %704 = vmatpush1.msra.mxu0 0.0
        %705 = vmatprep.subr.mxu0 0.0
        %706 = vmatpush1.msra.mxu0 0.0
        %707 = vmatprep.subr.mxu0 0.0
        %708 = vmatpush1.msra.mxu0 0.0
        %709 = vmatprep.subr.mxu0 0.0
        %710 = vmatpush1.msra.mxu0 0.0
        %711 = vmatprep.subr.mxu0 0.0
        %712 = vmatpush1.msra.mxu0 0.0
        %713 = vmatprep.subr.mxu0 0.0
        %714 = vmatpush1.msra.mxu0 0.0
        %715 = vmatprep.subr.mxu0 0.0
        %716 = vmatpush1.msra.mxu0 0.0
        %717 = vmatprep.subr.mxu0 0.0
        %718 = vmatpush1.msra.mxu0 0.0
        %719 = vmatprep.subr.mxu0 0.0
        %720 = vmatpush1.msra.mxu0 0.0
        %721 = vmatprep.subr.mxu0 0.0
        %722 = vmatpush1.msra.mxu0 0.0
        %723 = vmatprep.subr.mxu0 0.0
        %724 = vmatpush1.msra.mxu0 0.0
        %725 = vmatprep.subr.mxu0 0.0
        %726 = vmatpush1.msra.mxu0 0.0
        %727 = vmatprep.subr.mxu0 0.0
        %728 = vmatpush1.msra.mxu0 0.0
        %729 = vmatprep.mubr.f32.mxu0 0.0
        %730 = vmatmul.mubr.f32.gmra.mrb[0].mxu0 %v481
        %v731 = vpop.f32.mrb[0].mxu0
        %v732 = vadd.f32 %v467, %v731
        %v733 = vpop.f32.mrb[0].mxu0
        %734 = vmatprep.mubr.f32.mxu0 0.0
        %735 = vmatmul.mubr.f32.gmra.mrb[0].mxu0 %v484
        %v736 = vpop.f32.mrb[0].mxu0
        %v737 = vadd.f32 %v472, %v736
        %v738 = vpop.f32.mrb[0].mxu0
        %739 = vmatprep.mubr.f32.mxu0 0.0
        %740 = vmatmul.mubr.f32.gmra.mrb[0].mxu0 %v487
        %v741 = vpop.f32.mrb[0].mxu0
        %v742 = vadd.f32 %v477, %v741
        %v743 = vpop.f32.mrb[0].mxu0
        %744 = vdwg.mxu0
        %v745 = vmax.f32 %v732, 0.0
        %v746 = vmax.f32 %v737, 0.0
        %v747 = vmax.f32 %v742, 0.0
        %v749 = vsel %vm489, %v747, 0
        %751 = vmatprep.subr.mxu0 0.0
        %752 = vmatpush1.msra.mxu0 %v745
        %753 = vmatprep.subr.mxu0 0.0
        %754 = vmatpush1.msra.mxu0 %v746
        %755 = vmatprep.subr.mxu0 0.0
        %756 = vmatpush1.msra.mxu0 %v749
        %757 = vmatprep.subr.mxu0 0.0
        %758 = vmatpush1.msra.mxu0 0.0
        %759 = vmatprep.subr.mxu0 0.0
        %760 = vmatpush1.msra.mxu0 0.0
        %761 = vmatprep.subr.mxu0 0.0
        %762 = vmatpush1.msra.mxu0 0.0
        %763 = vmatprep.subr.mxu0 0.0
        %764 = vmatpush1.msra.mxu0 0.0
        %765 = vmatprep.subr.mxu0 0.0
        %766 = vmatpush1.msra.mxu0 0.0
        %767 = vmatprep.subr.mxu0 0.0
        %768 = vmatpush1.msra.mxu0 0.0
        %769 = vmatprep.subr.mxu0 0.0
        %770 = vmatpush1.msra.mxu0 0.0
        %771 = vmatprep.subr.mxu0 0.0
        %772 = vmatpush1.msra.mxu0 0.0
        %773 = vmatprep.subr.mxu0 0.0
        %774 = vmatpush1.msra.mxu0 0.0
        %775 = vmatprep.subr.mxu0 0.0
        %776 = vmatpush1.msra.mxu0 0.0
        %777 = vmatprep.subr.mxu0 0.0
        %778 = vmatpush1.msra.mxu0 0.0
        %779 = vmatprep.subr.mxu0 0.0
        %780 = vmatpush1.msra.mxu0 0.0
        %781 = vmatprep.subr.mxu0 0.0
        %782 = vmatpush1.msra.mxu0 0.0
        %783 = vmatprep.subr.mxu0 0.0
        %784 = vmatpush1.msra.mxu0 0.0
        %785 = vmatprep.subr.mxu0 0.0
        %786 = vmatpush1.msra.mxu0 0.0
        %787 = vmatprep.subr.mxu0 0.0
        %788 = vmatpush1.msra.mxu0 0.0
        %789 = vmatprep.subr.mxu0 0.0
        %790 = vmatpush1.msra.mxu0 0.0
        %791 = vmatprep.subr.mxu0 0.0
        %792 = vmatpush1.msra.mxu0 0.0
        %793 = vmatprep.subr.mxu0 0.0
        %794 = vmatpush1.msra.mxu0 0.0
        %795 = vmatprep.subr.mxu0 0.0
        %796 = vmatpush1.msra.mxu0 0.0
        %797 = vmatprep.subr.mxu0 0.0
        %798 = vmatpush1.msra.mxu0 0.0
        %799 = vmatprep.subr.mxu0 0.0
        %800 = vmatpush1.msra.mxu0 0.0
        %801 = vmatprep.subr.mxu0 0.0
        %802 = vmatpush1.msra.mxu0 0.0
        %803 = vmatprep.subr.mxu0 0.0
        %804 = vmatpush1.msra.mxu0 0.0
        %805 = vmatprep.subr.mxu0 0.0
        %806 = vmatpush1.msra.mxu0 0.0
        %807 = vmatprep.subr.mxu0 0.0
        %808 = vmatpush1.msra.mxu0 0.0
        %809 = vmatprep.subr.mxu0 0.0
        %810 = vmatpush1.msra.mxu0 0.0
        %811 = vmatprep.subr.mxu0 0.0
        %812 = vmatpush1.msra.mxu0 0.0
        %813 = vmatprep.subr.mxu0 0.0
        %814 = vmatpush1.msra.mxu0 0.0
        %815 = vmatprep.mubr.f32.mxu0 0.0
        %816 = vmatmul.mubr.f32.gmra.mrb[0].mxu0 %v481
        %v817 = vpop.f32.mrb[0].mxu0
        %v818 = vadd.f32 %v467, %v817
        %v819 = vpop.f32.mrb[0].mxu0
        %820 = vmatprep.mubr.f32.mxu0 0.0
        %821 = vmatmul.mubr.f32.gmra.mrb[0].mxu0 %v484
        %v822 = vpop.f32.mrb[0].mxu0
        %v823 = vadd.f32 %v472, %v822
        %v824 = vpop.f32.mrb[0].mxu0
        %825 = vmatprep.mubr.f32.mxu0 0.0
        %826 = vmatmul.mubr.f32.gmra.mrb[0].mxu0 %v487
        %v827 = vpop.f32.mrb[0].mxu0
        %v828 = vadd.f32 %v477, %v827
        %v829 = vpop.f32.mrb[0].mxu0
        %830 = vdwg.mxu0
        %v831 = vmax.f32 %v818, 0.0
        %v832 = vmax.f32 %v823, 0.0
        %v833 = vmax.f32 %v828, 0.0
        %v835 = vsel %vm489, %v833, 0
        %837 = vmatprep.subr.mxu0 0.0
        %838 = vmatpush1.msra.mxu0 %v831
        %839 = vmatprep.subr.mxu0 0.0
        %840 = vmatpush1.msra.mxu0 %v832
        %841 = vmatprep.subr.mxu0 0.0
        %842 = vmatpush1.msra.mxu0 %v835
        %843 = vmatprep.subr.mxu0 0.0
        %844 = vmatpush1.msra.mxu0 0.0
        %845 = vmatprep.subr.mxu0 0.0
        %846 = vmatpush1.msra.mxu0 0.0
        %847 = vmatprep.subr.mxu0 0.0
        %848 = vmatpush1.msra.mxu0 0.0
        %849 = vmatprep.subr.mxu0 0.0
        %850 = vmatpush1.msra.mxu0 0.0
        %851 = vmatprep.subr.mxu0 0.0
        %852 = vmatpush1.msra.mxu0 0.0
        %853 = vmatprep.subr.mxu0 0.0
        %854 = vmatpush1.msra.mxu0 0.0
        %855 = vmatprep.subr.mxu0 0.0
        %856 = vmatpush1.msra.mxu0 0.0
        %857 = vmatprep.subr.mxu0 0.0
        %858 = vmatpush1.msra.mxu0 0.0
        %859 = vmatprep.subr.mxu0 0.0
        %860 = vmatpush1.msra.mxu0 0.0
        %861 = vmatprep.subr.mxu0 0.0
        %862 = vmatpush1.msra.mxu0 0.0
        %863 = vmatprep.subr.mxu0 0.0
        %864 = vmatpush1.msra.mxu0 0.0
        %865 = vmatprep.subr.mxu0 0.0
        %866 = vmatpush1.msra.mxu0 0.0
        %867 = vmatprep.subr.mxu0 0.0
        %868 = vmatpush1.msra.mxu0 0.0
        %869 = vmatprep.subr.mxu0 0.0
        %870 = vmatpush1.msra.mxu0 0.0
        %871 = vmatprep.subr.mxu0 0.0
        %872 = vmatpush1.msra.mxu0 0.0
        %873 = vmatprep.subr.mxu0 0.0
        %874 = vmatpush1.msra.mxu0 0.0
        %875 = vmatprep.subr.mxu0 0.0
        %876 = vmatpush1.msra.mxu0 0.0
        %877 = vmatprep.subr.mxu0 0.0
        %878 = vmatpush1.msra.mxu0 0.0
        %879 = vmatprep.subr.mxu0 0.0
        %880 = vmatpush1.msra.mxu0 0.0
        %881 = vmatprep.subr.mxu0 0.0
        %882 = vmatpush1.msra.mxu0 0.0
        %883 = vmatprep.subr.mxu0 0.0
        %884 = vmatpush1.msra.mxu0 0.0
        %885 = vmatprep.subr.mxu0 0.0
        %886 = vmatpush1.msra.mxu0 0.0
        %887 = vmatprep.subr.mxu0 0.0
        %888 = vmatpush1.msra.mxu0 0.0
        %889 = vmatprep.subr.mxu0 0.0
        %890 = vmatpush1.msra.mxu0 0.0
        %891 = vmatprep.subr.mxu0 0.0
        %892 = vmatpush1.msra.mxu0 0.0
        %893 = vmatprep.subr.mxu0 0.0
        %894 = vmatpush1.msra.mxu0 0.0
        %895 = vmatprep.subr.mxu0 0.0
        %896 = vmatpush1.msra.mxu0 0.0
        %897 = vmatprep.subr.mxu0 0.0
        %898 = vmatpush1.msra.mxu0 0.0
        %899 = vmatprep.subr.mxu0 0.0
        %900 = vmatpush1.msra.mxu0 0.0
        %901 = vmatprep.mubr.f32.mxu0 0.0
        %902 = vmatmul.mubr.f32.gmra.mrb[0].mxu0 %v481
        %v903 = vpop.f32.mrb[0].mxu0
        %v904 = vadd.f32 %v467, %v903
        %v905 = vpop.f32.mrb[0].mxu0
        %906 = vmatprep.mubr.f32.mxu0 0.0
        %907 = vmatmul.mubr.f32.gmra.mrb[0].mxu0 %v484
        %v908 = vpop.f32.mrb[0].mxu0
        %v909 = vadd.f32 %v472, %v908
        %v910 = vpop.f32.mrb[0].mxu0
        %911 = vmatprep.mubr.f32.mxu0 0.0
        %912 = vmatmul.mubr.f32.gmra.mrb[0].mxu0 %v487
        %v913 = vpop.f32.mrb[0].mxu0
        %v914 = vadd.f32 %v477, %v913
        %v915 = vpop.f32.mrb[0].mxu0
        %916 = vdwg.mxu0
        %v917 = vmax.f32 %v904, 0.0
        %v918 = vmax.f32 %v909, 0.0
        %v919 = vmax.f32 %v914, 0.0
        %v921 = vsel %vm489, %v919, 0
        %923 = vmatprep.subr.mxu0 0.0
        %924 = vmatpush1.msra.mxu0 %v917
        %925 = vmatprep.subr.mxu0 0.0
        %926 = vmatpush1.msra.mxu0 %v918
        %927 = vmatprep.subr.mxu0 0.0
        %928 = vmatpush1.msra.mxu0 %v921
        %929 = vmatprep.subr.mxu0 0.0
        %930 = vmatpush1.msra.mxu0 0.0
        %931 = vmatprep.subr.mxu0 0.0
        %932 = vmatpush1.msra.mxu0 0.0
        %933 = vmatprep.subr.mxu0 0.0
        %934 = vmatpush1.msra.mxu0 0.0
        %935 = vmatprep.subr.mxu0 0.0
        %936 = vmatpush1.msra.mxu0 0.0
        %937 = vmatprep.subr.mxu0 0.0
        %938 = vmatpush1.msra.mxu0 0.0
        %939 = vmatprep.subr.mxu0 0.0
        %940 = vmatpush1.msra.mxu0 0.0
        %941 = vmatprep.subr.mxu0 0.0
        %942 = vmatpush1.msra.mxu0 0.0
        %943 = vmatprep.subr.mxu0 0.0
        %944 = vmatpush1.msra.mxu0 0.0
        %945 = vmatprep.subr.mxu0 0.0
        %946 = vmatpush1.msra.mxu0 0.0
        %947 = vmatprep.subr.mxu0 0.0
        %948 = vmatpush1.msra.mxu0 0.0
        %949 = vmatprep.subr.mxu0 0.0
        %950 = vmatpush1.msra.mxu0 0.0
        %951 = vmatprep.subr.mxu0 0.0
        %952 = vmatpush1.msra.mxu0 0.0
        %953 = vmatprep.subr.mxu0 0.0
        %954 = vmatpush1.msra.mxu0 0.0
        %955 = vmatprep.subr.mxu0 0.0
        %956 = vmatpush1.msra.mxu0 0.0
        %957 = vmatprep.subr.mxu0 0.0
        %958 = vmatpush1.msra.mxu0 0.0
        %959 = vmatprep.subr.mxu0 0.0
        %960 = vmatpush1.msra.mxu0 0.0
        %961 = vmatprep.subr.mxu0 0.0
        %962 = vmatpush1.msra.mxu0 0.0
        %963 = vmatprep.subr.mxu0 0.0
        %964 = vmatpush1.msra.mxu0 0.0
        %965 = vmatprep.subr.mxu0 0.0
        %966 = vmatpush1.msra.mxu0 0.0
        %967 = vmatprep.subr.mxu0 0.0
        %968 = vmatpush1.msra.mxu0 0.0
        %969 = vmatprep.subr.mxu0 0.0
        %970 = vmatpush1.msra.mxu0 0.0
        %971 = vmatprep.subr.mxu0 0.0
        %972 = vmatpush1.msra.mxu0 0.0
        %973 = vmatprep.subr.mxu0 0.0
        %974 = vmatpush1.msra.mxu0 0.0
        %975 = vmatprep.subr.mxu0 0.0
        %976 = vmatpush1.msra.mxu0 0.0
        %977 = vmatprep.subr.mxu0 0.0
        %978 = vmatpush1.msra.mxu0 0.0
        %979 = vmatprep.subr.mxu0 0.0
        %980 = vmatpush1.msra.mxu0 0.0
        %981 = vmatprep.subr.mxu0 0.0
        %982 = vmatpush1.msra.mxu0 0.0
        %983 = vmatprep.subr.mxu0 0.0
        %984 = vmatpush1.msra.mxu0 0.0
        %985 = vmatprep.subr.mxu0 0.0
        %986 = vmatpush1.msra.mxu0 0.0
        %987 = vmatprep.mubr.f32.mxu0 0.0
        %988 = vmatmul.mubr.f32.gmra.mrb[0].mxu0 %v481
        %v989 = vpop.f32.mrb[0].mxu0
        %v990 = vadd.f32 %v467, %v989
        %v991 = vpop.f32.mrb[0].mxu0
        %992 = vmatprep.mubr.f32.mxu0 0.0
        %993 = vmatmul.mubr.f32.gmra.mrb[0].mxu0 %v484
        %v994 = vpop.f32.mrb[0].mxu0
        %v995 = vadd.f32 %v472, %v994
        %v996 = vpop.f32.mrb[0].mxu0
        %997 = vmatprep.mubr.f32.mxu0 0.0
        %998 = vmatmul.mubr.f32.gmra.mrb[0].mxu0 %v487
        %v999 = vpop.f32.mrb[0].mxu0
        %v1000 = vadd.f32 %v477, %v999
        %v1001 = vpop.f32.mrb[0].mxu0
        %1002 = vdwg.mxu0
        %v1003 = vmax.f32 %v990, 0.0
        %v1004 = vmax.f32 %v995, 0.0
        %v1005 = vmax.f32 %v1000, 0.0
        %v1007 = vsel %vm489, %v1005, 0
        %1009 = vmatprep.subr.mxu0 0.0
        %1010 = vmatpush1.msra.mxu0 %v1003
        %1011 = vmatprep.subr.mxu0 0.0
        %1012 = vmatpush1.msra.mxu0 %v1004
        %1013 = vmatprep.subr.mxu0 0.0
        %1014 = vmatpush1.msra.mxu0 %v1007
        %1015 = vmatprep.subr.mxu0 0.0
        %1016 = vmatpush1.msra.mxu0 0.0
        %1017 = vmatprep.subr.mxu0 0.0
        %1018 = vmatpush1.msra.mxu0 0.0
        %1019 = vmatprep.subr.mxu0 0.0
        %1020 = vmatpush1.msra.mxu0 0.0
        %1021 = vmatprep.subr.mxu0 0.0
        %1022 = vmatpush1.msra.mxu0 0.0
        %1023 = vmatprep.subr.mxu0 0.0
        %1024 = vmatpush1.msra.mxu0 0.0
        %1025 = vmatprep.subr.mxu0 0.0
        %1026 = vmatpush1.msra.mxu0 0.0
        %1027 = vmatprep.subr.mxu0 0.0
        %1028 = vmatpush1.msra.mxu0 0.0
        %1029 = vmatprep.subr.mxu0 0.0
        %1030 = vmatpush1.msra.mxu0 0.0
        %1031 = vmatprep.subr.mxu0 0.0
        %1032 = vmatpush1.msra.mxu0 0.0
        %1033 = vmatprep.subr.mxu0 0.0
        %1034 = vmatpush1.msra.mxu0 0.0
        %1035 = vmatprep.subr.mxu0 0.0
        %1036 = vmatpush1.msra.mxu0 0.0
        %1037 = vmatprep.subr.mxu0 0.0
        %1038 = vmatpush1.msra.mxu0 0.0
        %1039 = vmatprep.subr.mxu0 0.0
        %1040 = vmatpush1.msra.mxu0 0.0
        %1041 = vmatprep.subr.mxu0 0.0
        %1042 = vmatpush1.msra.mxu0 0.0
        %1043 = vmatprep.subr.mxu0 0.0
        %1044 = vmatpush1.msra.mxu0 0.0
        %1045 = vmatprep.subr.mxu0 0.0
        %1046 = vmatpush1.msra.mxu0 0.0
        %1047 = vmatprep.subr.mxu0 0.0
        %1048 = vmatpush1.msra.mxu0 0.0
        %1049 = vmatprep.subr.mxu0 0.0
        %1050 = vmatpush1.msra.mxu0 0.0
        %1051 = vmatprep.subr.mxu0 0.0
        %1052 = vmatpush1.msra.mxu0 0.0
        %1053 = vmatprep.subr.mxu0 0.0
        %1054 = vmatpush1.msra.mxu0 0.0
        %1055 = vmatprep.subr.mxu0 0.0
        %1056 = vmatpush1.msra.mxu0 0.0
        %1057 = vmatprep.subr.mxu0 0.0
        %1058 = vmatpush1.msra.mxu0 0.0
        %1059 = vmatprep.subr.mxu0 0.0
        %1060 = vmatpush1.msra.mxu0 0.0
        %1061 = vmatprep.subr.mxu0 0.0
        %1062 = vmatpush1.msra.mxu0 0.0
        %1063 = vmatprep.subr.mxu0 0.0
        %1064 = vmatpush1.msra.mxu0 0.0
        %1065 = vmatprep.subr.mxu0 0.0
        %1066 = vmatpush1.msra.mxu0 0.0
        %1067 = vmatprep.subr.mxu0 0.0
        %1068 = vmatpush1.msra.mxu0 0.0
        %1069 = vmatprep.subr.mxu0 0.0
        %1070 = vmatpush1.msra.mxu0 0.0
        %1071 = vmatprep.subr.mxu0 0.0
        %1072 = vmatpush1.msra.mxu0 0.0
        %1073 = vmatprep.mubr.f32.mxu0 0.0
        %1074 = vmatmul.mubr.f32.gmra.mrb[0].mxu0 %v481
        %v1075 = vpop.f32.mrb[0].mxu0
        %v1076 = vadd.f32 %v467, %v1075
        %v1077 = vpop.f32.mrb[0].mxu0
        %1078 = vmatprep.mubr.f32.mxu0 0.0
        %1079 = vmatmul.mubr.f32.gmra.mrb[0].mxu0 %v484
        %v1080 = vpop.f32.mrb[0].mxu0
        %v1081 = vadd.f32 %v472, %v1080
        %v1082 = vpop.f32.mrb[0].mxu0
        %1083 = vmatprep.mubr.f32.mxu0 0.0
        %1084 = vmatmul.mubr.f32.gmra.mrb[0].mxu0 %v487
        %v1085 = vpop.f32.mrb[0].mxu0
        %v1086 = vadd.f32 %v477, %v1085
        %v1087 = vpop.f32.mrb[0].mxu0
        %1088 = vdwg.mxu0
        %v1089 = vtanh.pop %v1076
        %v1090 = vtanh.pop %v1081
        %v1091 = vtanh.pop %v1086
        %1093 = vset.pattern.permute.xlu0 0
        %1094 = vperm.xlu0 %1093, %v370
        %v1095 = vpop.permute.xlu0 %1094
        %v1097 = vlaneseq
        %v1098 = vshrl.u32 %v1097, 7
        %v1099 = vsub.s32 0, %v1098
        %v1100 = vrot.slane %v1095, %v1099
        %v1102 = vsel %vm479, %v369, 0
        %v1105 = vsel %vm489, %v1091, 0
        %1107 = vmatprep.subr.mxu0 0.0
        %1108 = vmatpush1.msra.mxu0 %v1089
        %1109 = vmatprep.subr.mxu0 0.0
        %1110 = vmatpush1.msra.mxu0 %v1090
        %1111 = vmatprep.subr.mxu0 0.0
        %1112 = vmatpush1.msra.mxu0 %v1105
        %1113 = vmatprep.subr.mxu0 0.0
        %1114 = vmatpush1.msra.mxu0 0.0
        %1115 = vmatprep.subr.mxu0 0.0
        %1116 = vmatpush1.msra.mxu0 0.0
        %1117 = vmatprep.subr.mxu0 0.0
        %1118 = vmatpush1.msra.mxu0 0.0
        %1119 = vmatprep.subr.mxu0 0.0
        %1120 = vmatpush1.msra.mxu0 0.0
        %1121 = vmatprep.subr.mxu0 0.0
        %1122 = vmatpush1.msra.mxu0 0.0
        %1123 = vmatprep.subr.mxu0 0.0
        %1124 = vmatpush1.msra.mxu0 0.0
        %1125 = vmatprep.subr.mxu0 0.0
        %1126 = vmatpush1.msra.mxu0 0.0
        %1127 = vmatprep.subr.mxu0 0.0
        %1128 = vmatpush1.msra.mxu0 0.0
        %1129 = vmatprep.subr.mxu0 0.0
        %1130 = vmatpush1.msra.mxu0 0.0
        %1131 = vmatprep.subr.mxu0 0.0
        %1132 = vmatpush1.msra.mxu0 0.0
        %1133 = vmatprep.subr.mxu0 0.0
        %1134 = vmatpush1.msra.mxu0 0.0
        %1135 = vmatprep.subr.mxu0 0.0
        %1136 = vmatpush1.msra.mxu0 0.0
        %1137 = vmatprep.subr.mxu0 0.0
        %1138 = vmatpush1.msra.mxu0 0.0
        %1139 = vmatprep.subr.mxu0 0.0
        %1140 = vmatpush1.msra.mxu0 0.0
        %1141 = vmatprep.subr.mxu0 0.0
        %1142 = vmatpush1.msra.mxu0 0.0
        %1143 = vmatprep.subr.mxu0 0.0
        %1144 = vmatpush1.msra.mxu0 0.0
        %1145 = vmatprep.subr.mxu0 0.0
        %1146 = vmatpush1.msra.mxu0 0.0
        %1147 = vmatprep.subr.mxu0 0.0
        %1148 = vmatpush1.msra.mxu0 0.0
        %1149 = vmatprep.subr.mxu0 0.0
        %1150 = vmatpush1.msra.mxu0 0.0
        %1151 = vmatprep.subr.mxu0 0.0
        %1152 = vmatpush1.msra.mxu0 0.0
        %1153 = vmatprep.subr.mxu0 0.0
        %1154 = vmatpush1.msra.mxu0 0.0
        %1155 = vmatprep.subr.mxu0 0.0
        %1156 = vmatpush1.msra.mxu0 0.0
        %1157 = vmatprep.subr.mxu0 0.0
        %1158 = vmatpush1.msra.mxu0 0.0
        %1159 = vmatprep.subr.mxu0 0.0
        %1160 = vmatpush1.msra.mxu0 0.0
        %1161 = vmatprep.subr.mxu0 0.0
        %1162 = vmatpush1.msra.mxu0 0.0
        %1163 = vmatprep.subr.mxu0 0.0
        %1164 = vmatpush1.msra.mxu0 0.0
        %1165 = vmatprep.subr.mxu0 0.0
        %1166 = vmatpush1.msra.mxu0 0.0
        %1167 = vmatprep.subr.mxu0 0.0
        %1168 = vmatpush1.msra.mxu0 0.0
        %1169 = vmatprep.subr.mxu0 0.0
        %1170 = vmatpush1.msra.mxu0 0.0
        %1171 = vmatprep.mubr.f32.mxu0 0.0
        %1172 = vmatmul.mubr.f32.gmra.mrb[0].mxu0 %v1102
        %v1173 = vpop.f32.mrb[0].mxu0
        %v1174 = vadd.f32 %v1100, %v1173
        %v1175 = vpop.f32.mrb[0].mxu0
        %1176 = vdwg.mxu0
        %1177 = vst [vmem:[%s344] sm:$0x1] %v1174
        %s1178 = sand.u32 %s237, 1
        %s1179 = scalar_lea.sflag [#allocation4], %s1178
        %s1180 = sand.u32 %s237, 1
        %s1181 = scalar_lea.vmem [#allocation3], %s1180
        // Predicated region
        $region57: #{tpu_custom_call.1} parent=55 // pred_check
          %p1182 = pneg %p247
        $region58: #{tpu_custom_call.1} parent=55 // pred_check_branch
          %1184 = sbr.rel (%p1182) target = $region60
        $region59: #{tpu_custom_call.1} parent=55 // pred_region
          %s1186 = ssub.s32 16, 16
          %1187 = vsyncadd %s1179, %s1186
          %s1188 = smul.addr %s25, 16
          %s1189 = scalar_lea.hbm %s9, %s1188
          %s1191 = sshll.u32 %s1181, 4
          %s1192 = int_to_ptr.vmem [resolvable:$true] %s1191
          %1194 = dma.vmem_to_hbm [thread:$0]  %s1192, 16, %s1189, %s1179
        $region60: #{tpu_custom_call.1} parent=55 // pred_fallthru
          _
      $region56: #{tpu_custom_call.1} parent=5 // pred_fallthru
        _
      %p1195 = scmp.le.s32.totalorder 2, %s20
      // Predicated region
      $region61: #{tpu_custom_call.1} parent=5 // pred_check
        %p1196 = pneg %p1195
      $region62: #{tpu_custom_call.1} parent=5 // pred_check_branch
        %1198 = sbr.rel (%p1196) target = $region64
      $region63: #{tpu_custom_call.1} parent=5 // pred_region
        %s1199 = ssub.s32 %s20, 2
        // Predicated region
        $region65: #{tpu_custom_call.1} parent=63 // pred_check
          %p1200 = pneg %p253
        $region66: #{tpu_custom_call.1} parent=63 // pred_check_branch
          %1202 = sbr.rel (%p1200) target = $region68
        $region67: #{tpu_custom_call.1} parent=63 // pred_region
          %s1203 = sand.u32 %s238, 1
          %s1204 = scalar_lea.sflag [#allocation4], %s1203
          %s1205 = sand.u32 %s238, 1
          %s1206 = scalar_lea.vmem [#allocation3], %s1205
          %1207 = dma.done %s1204, 16
        $region68: #{tpu_custom_call.1} parent=63 // pred_fallthru
          _
      $region64: #{tpu_custom_call.1} parent=5 // pred_fallthru
        _
    $region6: #{tpu_custom_call.1} parent=1 // loop_footer
      %s24 = sadd.s32 1, %s20
    $region7: #{tpu_custom_call.1} parent=1 // loop_footer_branch
      %19 = sbr.rel target = $region3
    $region8: #{tpu_custom_call.1} parent=1 // loop_exit
      _
    %1208 = vsyncpa [#allocation4], 1
    %s1209 = scalar_lea.sflag [#allocation4], 1
    %1210 = vsyncpa %s1209, 1

</llo_original>
